<compile_context>
chip_gen: v5e
topology: v5e:2x2
jax: 0.10.0
libtpu: 0.0.40
codegen_flags: <defaults>
</compile_context>

<pallas_src>
import numpy as np
import jax
import jax.numpy as jnp
from jax import lax
from jax.experimental import pallas as pl
from jax.experimental.pallas import tpu as pltpu


# ----------------------- diffusion schedule (numpy, matches __init__) --------
def make_linear_betas(n_timestep, linear_start=1e-6, linear_end=0.01):
    # schedule='linear' in GaussianDiffusion.__init__
    return np.linspace(linear_start, linear_end, n_timestep, dtype=np.float64)


def _round_up(x, m):
    return ((x + m - 1) // m) * m


# ------------------------------- wrapper --------------------------------------
def gaussian_diffusion_loss(x_cond, x_start, noise, sqrt_alpha, params):
    """x_cond/x_start/noise: (B, C, HW) f32; sqrt_alpha: (B,) f32. Returns scalar L1 loss."""
    B, C, HW = x_start.shape
    N = B * HW
    HID = params["w2"].shape[0]

    # ---- layout plumbing (wrapper side, tiny tensors) -------------------------
    # batch onto the lane axis: (B, C, HW) -> (C, B*HW); lane n = b*HW + s
    to_lane = lambda x: jnp.transpose(x, (1, 0, 2)).reshape(C, N)
    xc, xs, nz = to_lane(x_cond), to_lane(x_start), to_lane(noise)

    sigma = jnp.sqrt(jnp.maximum(1.0 - sqrt_alpha * sqrt_alpha, 0.0))        # (B,)
    a_row = jnp.repeat(sqrt_alpha, HW)[None, :]                              # (1, N)
    sg_row = jnp.repeat(sigma, HW)[None, :]                                  # (1, N)
    b1_bn = params["b1"] + sqrt_alpha[:, None] * params["wnl"]               # (B, HID)
    b1_slab = jnp.repeat(b1_bn.T, HW, axis=1)                                # (HID, N)
    b2_slab = jnp.broadcast_to(params["b2"].T, (C, N))                       # (C, N)

    # single lane-wide slab (one DMA): rows are sublane sections
    R_XC, R_XS, R_NZ, R_B2 = 0, C, 2 * C, 3 * C
    R_A = _round_up(4 * C, 8)
    R_SG = R_A + 1
    R_B1 = _round_up(R_SG + 1, 8)
    n_rows = R_B1 + HID
    pad1 = jnp.zeros((R_A - 4 * C, N), jnp.float32)
    pad2 = jnp.zeros((R_B1 - (R_SG + 1), N), jnp.float32)
    slab = jnp.concatenate(
        [xc, xs, nz, b2_slab, pad1, a_row, sg_row, pad2, b1_slab], axis=0)

    w1_stack = jnp.stack([params["w1c"].T, params["w1n"].T], axis=0)         # (2, HID, C)
    w2t = params["w2"].T                                                      # (C, HID)

    inv_count = 1.0 / float(B * C * HW)

    # --------------------------- Pallas kernel ---------------------------------
    def p_losses_kernel(slab_ref, w1_ref, w2t_ref, loss_ref):
        # lane-dense per-element data (batch on lanes, channels on sublanes)
        xc_v = slab_ref[R_XC:R_XC + C, :]          # (C, N)
        xs_v = slab_ref[R_XS:R_XS + C, :]
        nz_v = slab_ref[R_NZ:R_NZ + C, :]
        b2_v = slab_ref[R_B2:R_B2 + C, :]
        a_v = slab_ref[R_A:R_A + 1, :]             # (1, N)
        sg_v = slab_ref[R_SG:R_SG + 1, :]
        b1_v = slab_ref[R_B1:R_B1 + HID, :]        # (HID, N) = b1 + a*wnl, pre-broadcast

        # ---- q_sample: one shot over the whole batch (pure VPU, lane-dense) ----
        x_noisy = a_v * xs_v + sg_v * nz_v         # (C, N)

        # ---- denoise_fn layer 1: two shallow matmuls straight from vregs ----
        # (no concat scratch; equivalent to dot(w1t, [x_cond; x_noisy]))
        h = jnp.dot(w1_ref[0], xc_v,
                    preferred_element_type=jnp.float32,
                    precision=lax.Precision.DEFAULT)
        h = h + jnp.dot(w1_ref[1], x_noisy,
                        preferred_element_type=jnp.float32,
                        precision=lax.Precision.DEFAULT)
        h = jnp.maximum(h + b1_v, 0.0)             # (HID, N)

        # ---- denoise_fn layer 2 (single batched matmul) ----
        x_recon = jnp.dot(w2t_ref[...], h,
                          preferred_element_type=jnp.float32,
                          precision=lax.Precision.DEFAULT) + b2_v    # (C, N)

        # ---- L1 mean, finished in-kernel (XLU reduce -> SMEM scalar) ----
        loss_ref[0, 0] = jnp.sum(jnp.abs(nz_v - x_recon)) * inv_count

    grid_spec = pltpu.PrefetchScalarGridSpec(
        num_scalar_prefetch=0,
        grid=(1,),                                   # whole batch in one kernel step
        in_specs=[
            pl.BlockSpec((n_rows, N), lambda i: (0, 0)),      # fused data slab
            pl.BlockSpec((2, HID, C), lambda i: (0, 0, 0)),   # [w1c^T, w1n^T]
            pl.BlockSpec((C, HID), lambda i: (0, 0)),         # w2^T
        ],
        out_specs=pl.BlockSpec(memory_space=pltpu.MemorySpace.SMEM),
    )

    loss = pl.pallas_call(
        p_losses_kernel,
        out_shape=jax.ShapeDtypeStruct((1, 1), jnp.float32),
        grid_spec=grid_spec,
        compiler_params=pltpu.CompilerParams(
            dimension_semantics=("arbitrary",)),
    )(slab, w1_stack, w2t)
    return loss[0, 0]


# --------------------------------- main ----------------------------------------
if __name__ == "__main__":
    B, C, H, W = 2, 4, 16, 16        # small shapes consistent with p_losses ([b,c,h,w])
    HID = 32                         # hidden width of the synthetic denoise_fn
    T = 2000                         # timesteps (module default)
    HW = H * W

    key = jax.random.PRNGKey(0)
    k_xc, k_xs, k_nz, k_t, k_a, k_w1, k_w2, k_wnl = jax.random.split(key, 8)

    # inputs in PyTorch NCHW layout
    x_cond_nchw = jax.random.normal(k_xc, (B, C, H, W), jnp.float32)
    x_start_nchw = jax.random.normal(k_xs, (B, C, H, W), jnp.float32)

    # schedule buffers (float64 numpy, as in __init__)
    betas = make_linear_betas(T, 1e-6, 0.01)
    alphas = 1.0 - betas
    alphas_cumprod = np.cumprod(alphas, axis=0)
    sqrt_alphas_cumprod_prev = np.sqrt(np.append(1.0, alphas_cumprod))   # (T+1,)

    # p_losses randomness, made deterministic (glue):
    #   t ~ U{1..T};  a_b ~ U[sqrt_ac_prev[t-1], sqrt_ac_prev[t]]  per batch element
    t = int(jax.random.randint(k_t, (), 1, T + 1))
    lo = float(sqrt_alphas_cumprod_prev[t - 1])
    hi = float(sqrt_alphas_cumprod_prev[t])
    sqrt_alpha = jax.random.uniform(k_a, (B,), jnp.float32,
                                    minval=min(lo, hi), maxval=max(lo, hi))

    # noise_mix_ratio=None -> natural_noise reduces to plain Gaussian noise.
    # TODO(synk): bandpass-filtered noise (scipy butter/filtfilt) has no clean Pallas equivalent.
    noise_nchw = jax.random.normal(k_nz, (B, C, H, W), jnp.float32)

    # NCHW -> (B, C, H*W): pure reshape, spatial on the fast axis.
    to_kernel = lambda x: x.reshape(B, C, HW)
    x_cond = to_kernel(x_cond_nchw)
    x_start = to_kernel(x_start_nchw)
    noise = to_kernel(noise_nchw)

    # deterministic synthetic denoise_fn parameters
    # (denoise_fn is an external module in the reference; synthesized here)
    params = {
        "w1c": 0.1 * jax.random.normal(jax.random.fold_in(k_w1, 0), (C, HID), jnp.float32),
        "w1n": 0.1 * jax.random.normal(jax.random.fold_in(k_w1, 1), (C, HID), jnp.float32),
        "b1":  jnp.zeros((1, HID), jnp.float32),
        "wnl": 0.1 * jax.random.normal(k_wnl, (1, HID), jnp.float32),
        "w2":  0.1 * jax.random.normal(k_w2, (HID, C), jnp.float32),
        "b2":  jnp.zeros((1, C), jnp.float32),
    }

    loss = gaussian_diffusion_loss(x_cond, x_start, noise, sqrt_alpha, params)
    jax.block_until_ready(loss)

    # lightweight correctness check against a pure-JAX reference (channels-last)
    def ref(xc, xs, nz, a, p):
        a3 = a[:, None, None]
        xn = a3 * xs + jnp.sqrt(1.0 - a3 ** 2) * nz
        h = xc @ p["w1c"] + xn @ p["w1n"] + p["b1"][None] + a3 * p["wnl"][None]
        h = jnp.maximum(h, 0.0)
        xr = h @ p["w2"] + p["b2"][None]
        return jnp.mean(jnp.abs(nz - xr))

    to_cl = lambda x: jnp.transpose(x, (0, 2, 1))     # (B, C, HW) -> (B, HW, C)
    ref_loss = ref(to_cl(x_cond), to_cl(x_start), to_cl(noise), sqrt_alpha, params)
    # tolerance accounts for single-pass (bf16-input) MXU precision in the kernel
    assert abs(float(loss) - float(ref_loss)) < 2e-3, (float(loss), float(ref_loss))

    print("KERNEL_OK")
</pallas_src>

<mosaic_0001>
module attributes {stable_mosaic.version = 11 : i64} {
  func.func @p_losses_kernel(%arg0: i32, %arg1: memref<56x512xf32, #tpu.memory_space<vmem>>, %arg2: memref<2x32x4xf32, #tpu.memory_space<vmem>>, %arg3: memref<4x32xf32, #tpu.memory_space<vmem>>, %arg4: memref<1x1xf32, #tpu.memory_space<smem>>) attributes {dimension_semantics = [#tpu.dimension_semantics<arbitrary>], iteration_bounds = array<i64: 1>, scalar_prefetch = 0 : i64, scratch_operands = 0 : i64, tpu.core_type = #tpu.core_type<tc>, window_params = [{pipeline_mode = #tpu.pipeline_mode<synchronous>, transform_indices = @transform_0, window_bounds = array<i64: 56, 512>}, {pipeline_mode = #tpu.pipeline_mode<synchronous>, transform_indices = @transform_1, window_bounds = array<i64: 2, 32, 4>}, {pipeline_mode = #tpu.pipeline_mode<synchronous>, transform_indices = @transform_2, window_bounds = array<i64: 4, 32>}, {transform_indices = @transform_3, window_bounds = array<i64: 1, 1>}]} {
    %c0 = arith.constant 0 : index
    %c0_0 = arith.constant 0 : index
    %0 = vector.load %arg1[%c0, %c0_0] : memref<56x512xf32, #tpu.memory_space<vmem>>, vector<4x512xf32>
    %c4 = arith.constant 4 : index
    %c0_1 = arith.constant 0 : index
    %1 = vector.load %arg1[%c4, %c0_1] : memref<56x512xf32, #tpu.memory_space<vmem>>, vector<4x512xf32>
    %c8 = arith.constant 8 : index
    %c0_2 = arith.constant 0 : index
    %2 = vector.load %arg1[%c8, %c0_2] : memref<56x512xf32, #tpu.memory_space<vmem>>, vector<4x512xf32>
    %c12 = arith.constant 12 : index
    %c0_3 = arith.constant 0 : index
    %3 = vector.load %arg1[%c12, %c0_3] : memref<56x512xf32, #tpu.memory_space<vmem>>, vector<4x512xf32>
    %c16 = arith.constant 16 : index
    %c0_4 = arith.constant 0 : index
    %4 = vector.load %arg1[%c16, %c0_4] : memref<56x512xf32, #tpu.memory_space<vmem>>, vector<1x512xf32>
    %c17 = arith.constant 17 : index
    %c0_5 = arith.constant 0 : index
    %5 = vector.load %arg1[%c17, %c0_5] : memref<56x512xf32, #tpu.memory_space<vmem>>, vector<1x512xf32>
    %c24 = arith.constant 24 : index
    %c0_6 = arith.constant 0 : index
    %6 = vector.load %arg1[%c24, %c0_6] : memref<56x512xf32, #tpu.memory_space<vmem>>, vector<32x512xf32>
    %7 = vector.broadcast %4 : vector<1x512xf32> to vector<4x512xf32>
    %8 = arith.mulf %7, %1 : vector<4x512xf32>
    %9 = vector.broadcast %5 : vector<1x512xf32> to vector<4x512xf32>
    %10 = arith.mulf %9, %2 : vector<4x512xf32>
    %11 = arith.addf %8, %10 : vector<4x512xf32>
    %c0_7 = arith.constant 0 : index
    %c0_8 = arith.constant 0 : index
    %c0_9 = arith.constant 0 : index
    %12 = vector.load %arg2[%c0_7, %c0_8, %c0_9] : memref<2x32x4xf32, #tpu.memory_space<vmem>>, vector<1x32x4xf32>
    %13 = vector.shape_cast %12 : vector<1x32x4xf32> to vector<32x4xf32>
    %cst = arith.constant dense<0.000000e+00> : vector<32x512xf32>
    %14 = tpu.matmul %13, %0, %cst {dimension_numbers = #tpu.dot_dimension_numbers<[1], [0], [0], [1], [0, 0, 1, 1], [], []>} : vector<32x4xf32>, vector<4x512xf32>, vector<32x512xf32> -> vector<32x512xf32>
    %c1 = arith.constant 1 : index
    %c0_10 = arith.constant 0 : index
    %c0_11 = arith.constant 0 : index
    %15 = vector.load %arg2[%c1, %c0_10, %c0_11] : memref<2x32x4xf32, #tpu.memory_space<vmem>>, vector<1x32x4xf32>
    %16 = vector.shape_cast %15 : vector<1x32x4xf32> to vector<32x4xf32>
    %cst_12 = arith.constant dense<0.000000e+00> : vector<32x512xf32>
    %17 = tpu.matmul %16, %11, %cst_12 {dimension_numbers = #tpu.dot_dimension_numbers<[1], [0], [0], [1], [0, 0, 1, 1], [], []>} : vector<32x4xf32>, vector<4x512xf32>, vector<32x512xf32> -> vector<32x512xf32>
    %18 = arith.addf %14, %17 : vector<32x512xf32>
    %19 = arith.addf %18, %6 : vector<32x512xf32>
    %cst_13 = arith.constant 0.000000e+00 : f32
    %20 = vector.broadcast %cst_13 : f32 to vector<32x512xf32>
    %21 = arith.maximumf %19, %20 : vector<32x512xf32>
    %c0_14 = arith.constant 0 : index
    %c0_15 = arith.constant 0 : index
    %22 = vector.load %arg3[%c0_14, %c0_15] : memref<4x32xf32, #tpu.memory_space<vmem>>, vector<4x32xf32>
    %cst_16 = arith.constant dense<0.000000e+00> : vector<4x512xf32>
    %23 = tpu.matmul %22, %21, %cst_16 {dimension_numbers = #tpu.dot_dimension_numbers<[1], [0], [0], [1], [0, 0, 1, 1], [], []>} : vector<4x32xf32>, vector<32x512xf32>, vector<4x512xf32> -> vector<4x512xf32>
    %24 = arith.addf %23, %3 : vector<4x512xf32>
    %25 = arith.subf %2, %24 : vector<4x512xf32>
    %26 = math.absf %25 : vector<4x512xf32>
    %27 = vector.shape_cast %26 : vector<4x512xf32> to vector<1x4x512xf32>
    %cst_17 = arith.constant dense<0.000000e+00> : vector<1xf32>
    %28 = vector.multi_reduction <add>, %27, %cst_17 [1, 2] : vector<1x4x512xf32> to vector<1xf32>
    %29 = vector.shape_cast %28 : vector<1xf32> to vector<1x1x1xf32>
    %30 = vector.extract %29[0, 0, 0] : f32 from vector<1x1x1xf32>
    %cst_18 = arith.constant 4.8828125E-4 : f32
    %31 = arith.mulf %30, %cst_18 : f32
    %c0_19 = arith.constant 0 : index
    %c0_20 = arith.constant 0 : index
    %32 = memref.load %arg4[%c0_19, %c0_20] : memref<1x1xf32, #tpu.memory_space<smem>>
    memref.store %31, %arg4[%c0_19, %c0_20] : memref<1x1xf32, #tpu.memory_space<smem>>
    return
  }
  func.func @transform_0(%arg0: i32) -> (i32, i32) {
    %c0_i32 = arith.constant 0 : i32
    %c0_i32_0 = arith.constant 0 : i32
    %c0_i32_1 = arith.constant 0 : i32
    return %c0_i32, %c0_i32_0 : i32, i32
  }
  func.func @transform_1(%arg0: i32) -> (i32, i32, i32) {
    %c0_i32 = arith.constant 0 : i32
    %c0_i32_0 = arith.constant 0 : i32
    %c0_i32_1 = arith.constant 0 : i32
    %c0_i32_2 = arith.constant 0 : i32
    return %c0_i32, %c0_i32_0, %c0_i32_1 : i32, i32, i32
  }
  func.func @transform_2(%arg0: i32) -> (i32, i32) {
    %c0_i32 = arith.constant 0 : i32
    %c0_i32_0 = arith.constant 0 : i32
    %c0_i32_1 = arith.constant 0 : i32
    return %c0_i32, %c0_i32_0 : i32, i32
  }
  func.func @transform_3(%arg0: i32) -> (i32, i32) {
    %c0_i32 = arith.constant 0 : i32
    %c0_i32_0 = arith.constant 0 : i32
    %c0_i32_1 = arith.constant 0 : i32
    return %c0_i32, %c0_i32_0 : i32, i32
  }
}

</mosaic_0001>

<llo_original>
// kernel: tpu_custom_call.1
$region0: #{tpu_custom_call.1}
  #allocation0 [shape = 'u32[]', space=smem, size = 0x4, offset = 0x4, fixed_abs, tag = 'smem constant byte address 0x4 - core index']
  #allocation1 [shape = 'u32[72,128]{1,0:T(1,128)}', space=vmem, size = 0x9000, scoped, tag = 'internal scratch']
  %s0 = inlined_call_operand.hbm [shape: f32[56,512], index: 0, kind: input, shape index: {}]
  %s1 = inlined_call_operand.vmem [shape: f32[2,32,4], index: 1, kind: input, shape index: {}]
  %s2 = inlined_call_operand.vmem [shape: f32[4,32], index: 2, kind: input, shape index: {}]
  %s3 = inlined_call_operand.hbm [shape: f32[1,1], index: 3, kind: output, shape index: {}]
  %s4 = sld [smem:[#allocation0]]
  $region26: #{tpu_custom_call.1} parent=0
    _
  %s6 = ssub.s32 1, %s4
  %s7 = scalar_select 0, %s6, %s4
  $region1: #{tpu_custom_call.1} parent=0
    #allocation2 [shape = 'u8[114688]{0}', space=vmem, size = 0x1c000, scoped, tag = 'input window, operand 0, single buffered']
    #allocation3 [shape = 's32[1]{0}', space=sflag, size = 0x4, scoped, tag = 'scoped memory for tpu_custom_call.1']
    #allocation4 [shape = 's32[1]{0}', space=sflag, size = 0x4, scoped, tag = 'scoped memory for tpu_custom_call.1']
    #allocation5 [shape = 'u8[512]{0}', space=smem, size = 0x200, scoped, tag = 'output window, operand 0, single buffered']
    %8 = vsyncpa [#allocation3], 0
    %9 = vsyncpa [#allocation4], 0
    // Predicated region
    $region2: #{tpu_custom_call.1} parent=1 // pred_check
      _
    $region3: #{tpu_custom_call.1} parent=1 // pred_check_branch
      %11 = sbr.rel (0) target = $region5
    $region4: #{tpu_custom_call.1} parent=1 // pred_region
      %13 = vsyncadd [#allocation3], 0
      %s14 = sshll.u32 %s0, 4
      %s15 = int_to_ptr.hbm [resolvable:$true] %s14
      %s16 = sshll.u32 [#allocation2], 4
      %s17 = int_to_ptr.vmem [resolvable:$true] %s16
      %22 = dma.hbm_to_vmem [thread:$0]  %s15, 3584, %s17, [#allocation3], 512, 512, 32
    $region5: #{tpu_custom_call.1} parent=1 // pred_fallthru
      _
    // Predicated region
    $region6: #{tpu_custom_call.1} parent=1 // pred_check
      _
    $region7: #{tpu_custom_call.1} parent=1 // pred_check_branch
      %24 = sbr.rel (0) target = $region9
    $region8: #{tpu_custom_call.1} parent=1 // pred_region
      _
    $region9: #{tpu_custom_call.1} parent=1 // pred_fallthru
      _
    // Predicated region
    $region10: #{tpu_custom_call.1} parent=1 // pred_check
      _
    $region11: #{tpu_custom_call.1} parent=1 // pred_check_branch
      %26 = sbr.rel (0) target = $region13
    $region12: #{tpu_custom_call.1} parent=1 // pred_region
      _
    $region13: #{tpu_custom_call.1} parent=1 // pred_fallthru
      _
    // Predicated region
    $region14: #{tpu_custom_call.1} parent=1 // pred_check
      _
    $region15: #{tpu_custom_call.1} parent=1 // pred_check_branch
      %28 = sbr.rel (0) target = $region17
    $region16: #{tpu_custom_call.1} parent=1 // pred_region
      %30 = dma.done [#allocation3], 3584
    $region17: #{tpu_custom_call.1} parent=1 // pred_fallthru
      _
    %v31 = vld [vmem:[#allocation2] sm:$0xf]
    %v32 = vld [vmem:[#allocation2 + $0x8] sm:$0xf]
    %v33 = vld [vmem:[#allocation2 + $0x10] sm:$0xf]
    %v34 = vld [vmem:[#allocation2 + $0x18] sm:$0xf]
    %v35 = vld [vmem:[#allocation2] sm:$0xf0]
    %v36 = vld [vmem:[#allocation2 + $0x8] sm:$0xf0]
    %v37 = vld [vmem:[#allocation2 + $0x10] sm:$0xf0]
    %v38 = vld [vmem:[#allocation2 + $0x18] sm:$0xf0]
    %v39 = vld [vmem:[#allocation2 + $0x20] sm:$0xf]
    %v40 = vld [vmem:[#allocation2 + $0x28] sm:$0xf]
    %v41 = vld [vmem:[#allocation2 + $0x30] sm:$0xf]
    %v42 = vld [vmem:[#allocation2 + $0x38] sm:$0xf]
    %v43 = vld [vmem:[#allocation2 + $0x20] sm:$0xf0]
    %v44 = vld [vmem:[#allocation2 + $0x28] sm:$0xf0]
    %v45 = vld [vmem:[#allocation2 + $0x30] sm:$0xf0]
    %v46 = vld [vmem:[#allocation2 + $0x38] sm:$0xf0]
    %s47 = scalar_lea.vmem [#allocation2], 64
    %v48 = vld [vmem:[%s47] ss:$8 sm:$0xf]
    %s49 = scalar_lea.vmem [#allocation2], 65
    %v50 = vld [vmem:[%s49] ss:$8 sm:$0xf]
    %v51 = vld [vmem:[#allocation2 + $0x60] sm:$0xff]
    %v52 = vld [vmem:[#allocation2 + $0x68] sm:$0xff]
    %v53 = vld [vmem:[#allocation2 + $0x70] sm:$0xff]
    %v54 = vld [vmem:[#allocation2 + $0x78] sm:$0xff]
    %v55 = vld [vmem:[#allocation2 + $0x80] sm:$0xff]
    %v56 = vld [vmem:[#allocation2 + $0x88] sm:$0xff]
    %v57 = vld [vmem:[#allocation2 + $0x90] sm:$0xff]
    %v58 = vld [vmem:[#allocation2 + $0x98] sm:$0xff]
    %v59 = vld [vmem:[#allocation2 + $0xa0] sm:$0xff]
    %v60 = vld [vmem:[#allocation2 + $0xa8] sm:$0xff]
    %v61 = vld [vmem:[#allocation2 + $0xb0] sm:$0xff]
    %v62 = vld [vmem:[#allocation2 + $0xb8] sm:$0xff]
    %v63 = vld [vmem:[#allocation2 + $0xc0] sm:$0xff]
    %v64 = vld [vmem:[#allocation2 + $0xc8] sm:$0xff]
    %v65 = vld [vmem:[#allocation2 + $0xd0] sm:$0xff]
    %v66 = vld [vmem:[#allocation2 + $0xd8] sm:$0xff]
    %v68 = vperm.slane %v48, 0
    %v69 = vperm.slane %v48, 1
    %v70 = vperm.slane %v48, 2
    %v71 = vperm.slane %v48, 3
    %v76 = vmul.f32 %v68, %v35
    %v77 = vmul.f32 %v69, %v36
    %v78 = vmul.f32 %v70, %v37
    %v79 = vmul.f32 %v71, %v38
    %v81 = vperm.slane %v50, 0
    %v82 = vperm.slane %v50, 1
    %v83 = vperm.slane %v50, 2
    %v84 = vperm.slane %v50, 3
    %v89 = vmul.f32 %v81, %v39
    %v90 = vmul.f32 %v82, %v40
    %v91 = vmul.f32 %v83, %v41
    %v92 = vmul.f32 %v84, %v42
    %v97 = vrot.slane %v89, 4
    %v98 = vrot.slane %v90, 4
    %v99 = vrot.slane %v91, 4
    %v100 = vrot.slane %v92, 4
    %v105 = vadd.f32 %v76, %v97
    %v106 = vadd.f32 %v77, %v98
    %v107 = vadd.f32 %v78, %v99
    %v108 = vadd.f32 %v79, %v100
    %v109 = vld [vmem:[%s1] sm:$0xff]
    %v110 = vld [vmem:[%s1 + $0x8] sm:$0xff]
    %v111 = vld [vmem:[%s1 + $0x10] sm:$0xff]
    %v112 = vld [vmem:[%s1 + $0x18] sm:$0xff]
    %s113 = scalar_lea.vmem %s1, 32
    %v114 = vld [vmem:[%s113] sm:$0xff]
    %v115 = vld [vmem:[%s113 + $0x8] sm:$0xff]
    %v116 = vld [vmem:[%s113 + $0x10] sm:$0xff]
    %v117 = vld [vmem:[%s113 + $0x18] sm:$0xff]
    %v122 = vrot.slane %v105, 4
    %v123 = vrot.slane %v106, 4
    %v124 = vrot.slane %v107, 4
    %v125 = vrot.slane %v108, 4
    %vm126 = vcmask 31744
    %v128 = vsel %vm126, %v114, 0
    %v131 = vsel %vm126, %v115, 0
    %v134 = vsel %vm126, %v116, 0
    %v137 = vsel %vm126, %v117, 0
    %vm139 = vcmask 1043456
    %v140 = vsel %vm139, %v122, 0
    %v142 = vsel %vm139, %v123, 0
    %v144 = vsel %vm139, %v124, 0
    %v146 = vsel %vm139, %v125, 0
    %148 = vmatpush.msra.mxu0 0.0
    %149 = vmatpush.msra.mxu0 0.0
    %150 = vmatpush.msra.mxu0 0.0
    %151 = vmatpush.msra.mxu0 0.0
    %152 = vmatpush.msra.mxu0 0.0
    %153 = vmatpush.msra.mxu0 0.0
    %154 = vmatpush.msra.mxu0 0.0
    %155 = vmatpush.msra.mxu0 0.0
    %156 = vmatpush.msra.mxu0 0.0
    %157 = vmatpush.msra.mxu0 0.0
    %158 = vmatpush.msra.mxu0 0.0
    %159 = vmatpush.msra.mxu0 0.0
    %160 = vmatpush.msra.mxu0 0.0
    %161 = vmatpush.msra.mxu0 0.0
    %162 = vmatpush.msra.mxu0 0.0
    %163 = vmatpush.msra.mxu0 %v140
    %164 = vmatmul.f32.gmra.mxu0 %v128
    %v165 = vpop.f32.mrf.mxu0
    %v166 = vadd.f32 0.0, %v165
    %167 = vmatmul.f32.gmra.mxu0 %v131
    %v168 = vpop.f32.mrf.mxu0
    %v169 = vadd.f32 0.0, %v168
    %170 = vmatmul.f32.gmra.mxu0 %v134
    %v171 = vpop.f32.mrf.mxu0
    %v172 = vadd.f32 0.0, %v171
    %173 = vmatmul.f32.gmra.mxu0 %v137
    %v174 = vpop.f32.mrf.mxu0
    %v175 = vadd.f32 0.0, %v174
    %176 = vdwg.mxu0
    %177 = vmatpush.msra.mxu0 0.0
    %178 = vmatpush.msra.mxu0 0.0
    %179 = vmatpush.msra.mxu0 0.0
    %180 = vmatpush.msra.mxu0 0.0
    %181 = vmatpush.msra.mxu0 0.0
    %182 = vmatpush.msra.mxu0 0.0
    %183 = vmatpush.msra.mxu0 0.0
    %184 = vmatpush.msra.mxu0 0.0
    %185 = vmatpush.msra.mxu0 0.0
    %186 = vmatpush.msra.mxu0 0.0
    %187 = vmatpush.msra.mxu0 0.0
    %188 = vmatpush.msra.mxu0 0.0
    %189 = vmatpush.msra.mxu0 0.0
    %190 = vmatpush.msra.mxu0 0.0
    %191 = vmatpush.msra.mxu0 0.0
    %192 = vmatpush.msra.mxu0 %v142
    %193 = vmatmul.f32.gmra.mxu0 %v128
    %v194 = vpop.f32.mrf.mxu0
    %v195 = vadd.f32 0.0, %v194
    %196 = vmatmul.f32.gmra.mxu0 %v131
    %v197 = vpop.f32.mrf.mxu0
    %v198 = vadd.f32 0.0, %v197
    %199 = vmatmul.f32.gmra.mxu0 %v134
    %v200 = vpop.f32.mrf.mxu0
    %v201 = vadd.f32 0.0, %v200
    %202 = vmatmul.f32.gmra.mxu0 %v137
    %v203 = vpop.f32.mrf.mxu0
    %v204 = vadd.f32 0.0, %v203
    %205 = vdwg.mxu0
    %206 = vmatpush.msra.mxu0 0.0
    %207 = vmatpush.msra.mxu0 0.0
    %208 = vmatpush.msra.mxu0 0.0
    %209 = vmatpush.msra.mxu0 0.0
    %210 = vmatpush.msra.mxu0 0.0
    %211 = vmatpush.msra.mxu0 0.0
    %212 = vmatpush.msra.mxu0 0.0
    %213 = vmatpush.msra.mxu0 0.0
    %214 = vmatpush.msra.mxu0 0.0
    %215 = vmatpush.msra.mxu0 0.0
    %216 = vmatpush.msra.mxu0 0.0
    %217 = vmatpush.msra.mxu0 0.0
    %218 = vmatpush.msra.mxu0 0.0
    %219 = vmatpush.msra.mxu0 0.0
    %220 = vmatpush.msra.mxu0 0.0
    %221 = vmatpush.msra.mxu0 %v144
    %222 = vmatmul.f32.gmra.mxu0 %v128
    %v223 = vpop.f32.mrf.mxu0
    %v224 = vadd.f32 0.0, %v223
    %225 = vmatmul.f32.gmra.mxu0 %v131
    %v226 = vpop.f32.mrf.mxu0
    %v227 = vadd.f32 0.0, %v226
    %228 = vmatmul.f32.gmra.mxu0 %v134
    %v229 = vpop.f32.mrf.mxu0
    %v230 = vadd.f32 0.0, %v229
    %231 = vmatmul.f32.gmra.mxu0 %v137
    %v232 = vpop.f32.mrf.mxu0
    %v233 = vadd.f32 0.0, %v232
    %234 = vdwg.mxu0
    %235 = vmatpush.msra.mxu0 0.0
    %236 = vmatpush.msra.mxu0 0.0
    %237 = vmatpush.msra.mxu0 0.0
    %238 = vmatpush.msra.mxu0 0.0
    %239 = vmatpush.msra.mxu0 0.0
    %240 = vmatpush.msra.mxu0 0.0
    %241 = vmatpush.msra.mxu0 0.0
    %242 = vmatpush.msra.mxu0 0.0
    %243 = vmatpush.msra.mxu0 0.0
    %244 = vmatpush.msra.mxu0 0.0
    %245 = vmatpush.msra.mxu0 0.0
    %246 = vmatpush.msra.mxu0 0.0
    %247 = vmatpush.msra.mxu0 0.0
    %248 = vmatpush.msra.mxu0 0.0
    %249 = vmatpush.msra.mxu0 0.0
    %250 = vmatpush.msra.mxu0 %v146
    %251 = vmatmul.f32.gmra.mxu0 %v128
    %v252 = vpop.f32.mrf.mxu0
    %v253 = vadd.f32 0.0, %v252
    %254 = vmatmul.f32.gmra.mxu0 %v131
    %v255 = vpop.f32.mrf.mxu0
    %v256 = vadd.f32 0.0, %v255
    %257 = vmatmul.f32.gmra.mxu0 %v134
    %v258 = vpop.f32.mrf.mxu0
    %v259 = vadd.f32 0.0, %v258
    %260 = vmatmul.f32.gmra.mxu0 %v137
    %v261 = vpop.f32.mrf.mxu0
    %v262 = vadd.f32 0.0, %v261
    %263 = vdwg.mxu0
    %v265 = vsel %vm126, %v109, 0
    %v268 = vsel %vm126, %v110, 0
    %v271 = vsel %vm126, %v111, 0
    %v274 = vsel %vm126, %v112, 0
    %v277 = vsel %vm139, %v31, 0
    %v280 = vsel %vm139, %v32, 0
    %v283 = vsel %vm139, %v33, 0
    %v286 = vsel %vm139, %v34, 0
    %288 = vmatpush.msra.mxu0 0.0
    %289 = vmatpush.msra.mxu0 0.0
    %290 = vmatpush.msra.mxu0 0.0
    %291 = vmatpush.msra.mxu0 0.0
    %292 = vmatpush.msra.mxu0 0.0
    %293 = vmatpush.msra.mxu0 0.0
    %294 = vmatpush.msra.mxu0 0.0
    %295 = vmatpush.msra.mxu0 0.0
    %296 = vmatpush.msra.mxu0 0.0
    %297 = vmatpush.msra.mxu0 0.0
    %298 = vmatpush.msra.mxu0 0.0
    %299 = vmatpush.msra.mxu0 0.0
    %300 = vmatpush.msra.mxu0 0.0
    %301 = vmatpush.msra.mxu0 0.0
    %302 = vmatpush.msra.mxu0 0.0
    %303 = vmatpush.msra.mxu0 %v277
    %304 = vmatmul.f32.gmra.mxu0 %v265
    %v305 = vpop.f32.mrf.mxu0
    %v306 = vadd.f32 %v166, %v305
    %307 = vmatmul.f32.gmra.mxu0 %v268
    %v308 = vpop.f32.mrf.mxu0
    %v309 = vadd.f32 %v169, %v308
    %310 = vmatmul.f32.gmra.mxu0 %v271
    %v311 = vpop.f32.mrf.mxu0
    %v312 = vadd.f32 %v172, %v311
    %313 = vmatmul.f32.gmra.mxu0 %v274
    %v314 = vpop.f32.mrf.mxu0
    %v315 = vadd.f32 %v175, %v314
    %316 = vdwg.mxu0
    %317 = vmatpush.msra.mxu0 0.0
    %318 = vmatpush.msra.mxu0 0.0
    %319 = vmatpush.msra.mxu0 0.0
    %320 = vmatpush.msra.mxu0 0.0
    %321 = vmatpush.msra.mxu0 0.0
    %322 = vmatpush.msra.mxu0 0.0
    %323 = vmatpush.msra.mxu0 0.0
    %324 = vmatpush.msra.mxu0 0.0
    %325 = vmatpush.msra.mxu0 0.0
    %326 = vmatpush.msra.mxu0 0.0
    %327 = vmatpush.msra.mxu0 0.0
    %328 = vmatpush.msra.mxu0 0.0
    %329 = vmatpush.msra.mxu0 0.0
    %330 = vmatpush.msra.mxu0 0.0
    %331 = vmatpush.msra.mxu0 0.0
    %332 = vmatpush.msra.mxu0 %v280
    %333 = vmatmul.f32.gmra.mxu0 %v265
    %v334 = vpop.f32.mrf.mxu0
    %v335 = vadd.f32 %v195, %v334
    %336 = vmatmul.f32.gmra.mxu0 %v268
    %v337 = vpop.f32.mrf.mxu0
    %v338 = vadd.f32 %v198, %v337
    %339 = vmatmul.f32.gmra.mxu0 %v271
    %v340 = vpop.f32.mrf.mxu0
    %v341 = vadd.f32 %v201, %v340
    %342 = vmatmul.f32.gmra.mxu0 %v274
    %v343 = vpop.f32.mrf.mxu0
    %v344 = vadd.f32 %v204, %v343
    %345 = vdwg.mxu0
    %346 = vmatpush.msra.mxu0 0.0
    %347 = vmatpush.msra.mxu0 0.0
    %348 = vmatpush.msra.mxu0 0.0
    %349 = vmatpush.msra.mxu0 0.0
    %350 = vmatpush.msra.mxu0 0.0
    %351 = vmatpush.msra.mxu0 0.0
    %352 = vmatpush.msra.mxu0 0.0
    %353 = vmatpush.msra.mxu0 0.0
    %354 = vmatpush.msra.mxu0 0.0
    %355 = vmatpush.msra.mxu0 0.0
    %356 = vmatpush.msra.mxu0 0.0
    %357 = vmatpush.msra.mxu0 0.0
    %358 = vmatpush.msra.mxu0 0.0
    %359 = vmatpush.msra.mxu0 0.0
    %360 = vmatpush.msra.mxu0 0.0
    %361 = vmatpush.msra.mxu0 %v283
    %362 = vmatmul.f32.gmra.mxu0 %v265
    %v363 = vpop.f32.mrf.mxu0
    %v364 = vadd.f32 %v224, %v363
    %365 = vmatmul.f32.gmra.mxu0 %v268
    %v366 = vpop.f32.mrf.mxu0
    %v367 = vadd.f32 %v227, %v366
    %368 = vmatmul.f32.gmra.mxu0 %v271
    %v369 = vpop.f32.mrf.mxu0
    %v370 = vadd.f32 %v230, %v369
    %371 = vmatmul.f32.gmra.mxu0 %v274
    %v372 = vpop.f32.mrf.mxu0
    %v373 = vadd.f32 %v233, %v372
    %374 = vdwg.mxu0
    %375 = vmatpush.msra.mxu0 0.0
    %376 = vmatpush.msra.mxu0 0.0
    %377 = vmatpush.msra.mxu0 0.0
    %378 = vmatpush.msra.mxu0 0.0
    %379 = vmatpush.msra.mxu0 0.0
    %380 = vmatpush.msra.mxu0 0.0
    %381 = vmatpush.msra.mxu0 0.0
    %382 = vmatpush.msra.mxu0 0.0
    %383 = vmatpush.msra.mxu0 0.0
    %384 = vmatpush.msra.mxu0 0.0
    %385 = vmatpush.msra.mxu0 0.0
    %386 = vmatpush.msra.mxu0 0.0
    %387 = vmatpush.msra.mxu0 0.0
    %388 = vmatpush.msra.mxu0 0.0
    %389 = vmatpush.msra.mxu0 0.0
    %390 = vmatpush.msra.mxu0 %v286
    %391 = vmatmul.f32.gmra.mxu0 %v265
    %v392 = vpop.f32.mrf.mxu0
    %v393 = vadd.f32 %v253, %v392
    %394 = vmatmul.f32.gmra.mxu0 %v268
    %v395 = vpop.f32.mrf.mxu0
    %v396 = vadd.f32 %v256, %v395
    %397 = vmatmul.f32.gmra.mxu0 %v271
    %v398 = vpop.f32.mrf.mxu0
    %v399 = vadd.f32 %v259, %v398
    %400 = vmatmul.f32.gmra.mxu0 %v274
    %v401 = vpop.f32.mrf.mxu0
    %v402 = vadd.f32 %v262, %v401
    %403 = vdwg.mxu0
    %v404 = vadd.f32 %v306, %v51
    %v405 = vadd.f32 %v335, %v52
    %v406 = vadd.f32 %v364, %v53
    %v407 = vadd.f32 %v393, %v54
    %v408 = vadd.f32 %v309, %v55
    %v409 = vadd.f32 %v338, %v56
    %v410 = vadd.f32 %v367, %v57
    %v411 = vadd.f32 %v396, %v58
    %v412 = vadd.f32 %v312, %v59
    %v413 = vadd.f32 %v341, %v60
    %v414 = vadd.f32 %v370, %v61
    %v415 = vadd.f32 %v399, %v62
    %v416 = vadd.f32 %v315, %v63
    %v417 = vadd.f32 %v344, %v64
    %v418 = vadd.f32 %v373, %v65
    %v419 = vadd.f32 %v402, %v66
    %v420 = vmax.f32 %v404, 0.0
    %v421 = vmax.f32 %v405, 0.0
    %v422 = vmax.f32 %v406, 0.0
    %v423 = vmax.f32 %v407, 0.0
    %v424 = vmax.f32 %v408, 0.0
    %v425 = vmax.f32 %v409, 0.0
    %v426 = vmax.f32 %v410, 0.0
    %v427 = vmax.f32 %v411, 0.0
    %v428 = vmax.f32 %v412, 0.0
    %v429 = vmax.f32 %v413, 0.0
    %v430 = vmax.f32 %v414, 0.0
    %v431 = vmax.f32 %v415, 0.0
    %v432 = vmax.f32 %v416, 0.0
    %v433 = vmax.f32 %v417, 0.0
    %v434 = vmax.f32 %v418, 0.0
    %v435 = vmax.f32 %v419, 0.0
    %v436 = vld [vmem:[%s2] sm:$0xf]
    %v441 = vrot.slane %v43, 4
    %v442 = vrot.slane %v44, 4
    %v443 = vrot.slane %v45, 4
    %v444 = vrot.slane %v46, 4
    %vm449 = vcmask 261120
    %v451 = vsel %vm449, %v436, 0
    %453 = vmatpush.msra.mxu0 0.0
    %454 = vmatpush.msra.mxu0 0.0
    %455 = vmatpush.msra.mxu0 0.0
    %456 = vmatpush.msra.mxu0 0.0
    %457 = vmatpush.msra.mxu0 0.0
    %458 = vmatpush.msra.mxu0 0.0
    %459 = vmatpush.msra.mxu0 0.0
    %460 = vmatpush.msra.mxu0 0.0
    %461 = vmatpush.msra.mxu0 0.0
    %462 = vmatpush.msra.mxu0 0.0
    %463 = vmatpush.msra.mxu0 0.0
    %464 = vmatpush.msra.mxu0 0.0
    %465 = vmatpush.msra.mxu0 %v432
    %466 = vmatpush.msra.mxu0 %v428
    %467 = vmatpush.msra.mxu0 %v424
    %468 = vmatpush.msra.mxu0 %v420
    %469 = vmatmul.f32.gmra.mxu0 %v451
    %v470 = vpop.f32.mrf.mxu0
    %v471 = vadd.f32 %v441, %v470
    %472 = vdwg.mxu0
    %473 = vmatpush.msra.mxu0 0.0
    %474 = vmatpush.msra.mxu0 0.0
    %475 = vmatpush.msra.mxu0 0.0
    %476 = vmatpush.msra.mxu0 0.0
    %477 = vmatpush.msra.mxu0 0.0
    %478 = vmatpush.msra.mxu0 0.0
    %479 = vmatpush.msra.mxu0 0.0
    %480 = vmatpush.msra.mxu0 0.0
    %481 = vmatpush.msra.mxu0 0.0
    %482 = vmatpush.msra.mxu0 0.0
    %483 = vmatpush.msra.mxu0 0.0
    %484 = vmatpush.msra.mxu0 0.0
    %485 = vmatpush.msra.mxu0 %v433
    %486 = vmatpush.msra.mxu0 %v429
    %487 = vmatpush.msra.mxu0 %v425
    %488 = vmatpush.msra.mxu0 %v421
    %489 = vmatmul.f32.gmra.mxu0 %v451
    %v490 = vpop.f32.mrf.mxu0
    %v491 = vadd.f32 %v442, %v490
    %492 = vdwg.mxu0
    %493 = vmatpush.msra.mxu0 0.0
    %494 = vmatpush.msra.mxu0 0.0
    %495 = vmatpush.msra.mxu0 0.0
    %496 = vmatpush.msra.mxu0 0.0
    %497 = vmatpush.msra.mxu0 0.0
    %498 = vmatpush.msra.mxu0 0.0
    %499 = vmatpush.msra.mxu0 0.0
    %500 = vmatpush.msra.mxu0 0.0
    %501 = vmatpush.msra.mxu0 0.0
    %502 = vmatpush.msra.mxu0 0.0
    %503 = vmatpush.msra.mxu0 0.0
    %504 = vmatpush.msra.mxu0 0.0
    %505 = vmatpush.msra.mxu0 %v434
    %506 = vmatpush.msra.mxu0 %v430
    %507 = vmatpush.msra.mxu0 %v426
    %508 = vmatpush.msra.mxu0 %v422
    %509 = vmatmul.f32.gmra.mxu0 %v451
    %v510 = vpop.f32.mrf.mxu0
    %v511 = vadd.f32 %v443, %v510
    %512 = vdwg.mxu0
    %513 = vmatpush.msra.mxu0 0.0
    %514 = vmatpush.msra.mxu0 0.0
    %515 = vmatpush.msra.mxu0 0.0
    %516 = vmatpush.msra.mxu0 0.0
    %517 = vmatpush.msra.mxu0 0.0
    %518 = vmatpush.msra.mxu0 0.0
    %519 = vmatpush.msra.mxu0 0.0
    %520 = vmatpush.msra.mxu0 0.0
    %521 = vmatpush.msra.mxu0 0.0
    %522 = vmatpush.msra.mxu0 0.0
    %523 = vmatpush.msra.mxu0 0.0
    %524 = vmatpush.msra.mxu0 0.0
    %525 = vmatpush.msra.mxu0 %v435
    %526 = vmatpush.msra.mxu0 %v431
    %527 = vmatpush.msra.mxu0 %v427
    %528 = vmatpush.msra.mxu0 %v423
    %529 = vmatmul.f32.gmra.mxu0 %v451
    %v530 = vpop.f32.mrf.mxu0
    %v531 = vadd.f32 %v444, %v530
    %532 = vdwg.mxu0
    %v533 = vsub.f32 %v39, %v471
    %v534 = vsub.f32 %v40, %v491
    %v535 = vsub.f32 %v41, %v511
    %v536 = vsub.f32 %v42, %v531
    %v537 = vand.u32 2147483647, %v533
    %v538 = vand.u32 2147483647, %v534
    %v539 = vand.u32 2147483647, %v535
    %v540 = vand.u32 2147483647, %v536
    %v541 = vsel %vm139, %v537, 0.0
    %v542 = vsel %vm139, %v538, 0.0
    %v543 = vadd.f32 %v541, %v542
    %v544 = vsel %vm139, %v539, 0.0
    %v545 = vadd.f32 %v543, %v544
    %v546 = vsel %vm139, %v540, 0.0
    %v547 = vadd.f32 %v545, %v546
    %548 = vadd.xlane.f32.xlu0 %v547
    %v549 = vpop.xlane.xlu0 %548
    %v550 = vrot.slane %v549, 4
    %v551 = vadd.f32 %v549, %v550
    %v552 = vrot.slane %v551, 2
    %v553 = vadd.f32 %v551, %v552
    %v554 = vrot.slane %v553, 1
    %v555 = vadd.f32 %v553, %v554
    %s556 = vtos %v555
    %s557 = smul.f32 %s556, 0.00048828125
    %s558 = scalar_lea.smem [#allocation5], 0
    %559 = sst [smem:[%s558]] %s557
    // Predicated region
    $region18: #{tpu_custom_call.1} parent=1 // pred_check
      _
    $region19: #{tpu_custom_call.1} parent=1 // pred_check_branch
      %561 = sbr.rel (0) target = $region21
    $region20: #{tpu_custom_call.1} parent=1 // pred_region
      %563 = vsyncadd [#allocation4], 0
      %s565 = sshll.u32 %s3, 4
      %s566 = int_to_ptr.hbm [resolvable:$true] %s565
      %568 = dma.smem_to_hbm [#allocation5], 16, %s566, [#allocation4]
    $region21: #{tpu_custom_call.1} parent=1 // pred_fallthru
      _
    // Predicated region
    $region22: #{tpu_custom_call.1} parent=1 // pred_check
      _
    $region23: #{tpu_custom_call.1} parent=1 // pred_check_branch
      %570 = sbr.rel (0) target = $region25
    $region24: #{tpu_custom_call.1} parent=1 // pred_region
      %572 = dma.done [#allocation4], 16
    $region25: #{tpu_custom_call.1} parent=1 // pred_fallthru
      _
    %573 = sfence
    %574 = vsyncpa [#allocation3], 1
    %575 = vsyncpa [#allocation4], 1

</llo_original>
